<compile_context>
chip_gen: v6e
topology: v6e:2x2x1
jax: 0.10.0
libtpu: 0.0.40
codegen_flags: <defaults>
</compile_context>

<pallas_src>
import math

import jax
import jax.numpy as jnp
from jax import lax
from jax.experimental import pallas as pl
from jax.experimental.pallas import tpu as pltpu


# ---------------------------------------------------------------------------
# Hardware-aware budgets & tiling helpers
# ---------------------------------------------------------------------------

def _vmem_budgets():
    """(vmem_limit_bytes, tile_budget_bytes) for the local TPU generation."""
    phys = 64 * 1024 * 1024          # conservative default (v7x physical VMEM)
    try:
        phys = int(pltpu.get_tpu_info().vmem_capacity_bytes)
    except Exception:
        pass
    phys = max(32 * 1024 * 1024, min(phys, 128 * 1024 * 1024))
    vmem_limit = int(phys * 0.70)    # ~90 MiB on v5e/v6e, ~45 MiB on v7x
    tile_budget = int(phys * 0.45)   # what the per-row tile accounting may use
    return vmem_limit, tile_budget


def _sublane_align(itemsize: int) -> int:
    # f32 -> 8 rows/vreg, bf16 -> 16, int8/fp8 -> 32 (sub-32-bit packs sublanes).
    return max(8, 32 // max(int(itemsize), 1))


def _packing_factor(n: int, d: int) -> int:
    """Rows-per-packed-row so the lane dim becomes a multiple of 128 (or 1)."""
    if d % 128 == 0:
        return 1
    r = 128 // math.gcd(d, 128)
    if r <= 32 and n % r == 0:
        return r
    return 1                          # fall back to masked stores (still correct)


def _pick_row_tile(n: int, bytes_per_row: int, tile_budget: int, sub: int) -> int:
    """Largest sublane-aligned row tile the budget allows (cap 8192 rows).
    If the whole problem fits one tile, split into 2 so a 'parallel' grid axis
    has work for both v7x TensorCores (harmless on single-TC v5e/v6e)."""
    tm = tile_budget // max(bytes_per_row, 1)
    tm = min(tm, 8192)
    tm = max(sub, (tm // sub) * sub)
    if n <= tm:
        if n >= 2 * sub:
            half = (n + 1) // 2
            tm = ((half + sub - 1) // sub) * sub
        else:
            tm = n                    # single tile; block == full dims is legal
    return tm


# ---------------------------------------------------------------------------
# In-kernel helpers
# ---------------------------------------------------------------------------

def _normalize_rows(xc, r: int, d: int):
    """Unit-normalize each *original* row of a (possibly lane-packed) centered
    tile xc of shape [TM, r*d].  Exact f32 segment reductions per d-wide lane
    group; all slice/reduce/concat work is hidden under the HBM DMA."""
    if r == 1:
        sq = jnp.sum(xc * xc, axis=1, keepdims=True)   # [TM, 1]
        return xc * lax.rsqrt(sq)                      # EUP slot; inf -> NaN like torch
    pieces = []
    for o in range(r):
        xc_o = xc[:, o * d:(o + 1) * d]                        # [TM, d]
        sq_o = jnp.sum(xc_o * xc_o, axis=1, keepdims=True)     # [TM, 1]
        pieces.append(xc_o * lax.rsqrt(sq_o))                  # [TM, d]
    return jnp.concatenate(pieces, axis=1)                     # [TM, r*d]


def _make_fused_kernel(n_rows: int, r: int, d: int):
    """Single-block fast path: whole (packed) array resident in VMEM, so x is
    read from HBM exactly once.  n_rows is the ORIGINAL row count."""
    inv_n = 1.0 / float(n_rows)

    def kernel(x_ref, o_ref):
        x = x_ref[...].astype(jnp.float32)                     # [Np, Dp]
        colsum = jnp.sum(x, axis=0, keepdims=True)             # [1, Dp]
        if r == 1:
            mean = colsum * inv_n
        else:
            # Fold the r packed-offset groups back to per-original-column sums,
            # then re-broadcast to the packed lane layout (tiny [1, Dp] work).
            acc = colsum[:, 0:d]
            for o in range(1, r):
                acc = acc + colsum[:, o * d:(o + 1) * d]
            mean_small = acc * inv_n                           # [1, d]
            mean = jnp.concatenate([mean_small] * r, axis=1)   # [1, Dp]
        xc = x - mean
        o_ref[...] = _normalize_rows(xc, r, d).astype(o_ref.dtype)

    return kernel


def _make_col_sum_kernel(n_rows: int, tm: int):
    """Phase A: per-tile partial column sums (packed-row count n_rows).
    Each grid step writes its own output block -> fully parallel."""
    needs_mask = (n_rows % tm) != 0

    def kernel(x_ref, psum_ref):
        x = x_ref[...].astype(jnp.float32)
        if not needs_mask:
            psum_ref[...] = jnp.sum(x, axis=0, keepdims=True)[None]
            return
        i = pl.program_id(0)
        last = pl.num_programs(0) - 1

        @pl.when(i != last)                     # full tiles: no mask cost at all
        def _full():
            psum_ref[...] = jnp.sum(x, axis=0, keepdims=True)[None]

        @pl.when(i == last)                     # partial tile: zero padded rows
        def _masked():
            row = i * tm + lax.broadcasted_iota(jnp.int32, x.shape, 0)
            xm = jnp.where(row < n_rows, x, 0.0)
            psum_ref[...] = jnp.sum(xm, axis=0, keepdims=True)[None]

    return kernel


def _make_normalize_kernel(r: int, d: int):
    """Phase B: subtract the pre-scaled column mean and row-normalize.
    Partial last tile reads padded rows; Pallas clips the write-back."""

    def kernel(x_ref, mean_ref, o_ref):
        xc = x_ref[...].astype(jnp.float32) - mean_ref[...]    # mean already /N
        o_ref[...] = _normalize_rows(xc, r, d).astype(o_ref.dtype)

    return kernel


# ---------------------------------------------------------------------------
# Wrapper
# ---------------------------------------------------------------------------

def to_sphere(x: jax.Array, *, force_two_pass: bool = False) -> jax.Array:
    """Pallas implementation of ToSphere.forward for a 2D input [N, D].

    Notes: rows whose centered value is exactly zero produce NaN (matches
    PyTorch x / x.norm()); the column mean is accumulated hierarchically in
    f32 (per-tile partials + a tiny XLA reduction).
    `force_two_pass` is a test/benchmark knob to skip the fused fast path.
    """
    assert x.ndim == 2, "ToSphere expects a 2D input [N, D]"
    n, d = x.shape
    assert n > 0 and d > 0
    out_dtype = x.dtype
    itemsize = int(jnp.dtype(x.dtype).itemsize)
    vmem_limit, tile_budget = _vmem_budgets()
    sub = _sublane_align(itemsize)

    # ---- lane-dense packing for D not a multiple of 128 ---------------------
    r = _packing_factor(n, d)
    np_, dp = n // r, d * r
    xw = x if r == 1 else x.reshape(np_, dp)

    # ---- fused single-pass fast path (whole working set VMEM-resident) ------
    fused_bytes = np_ * dp * (4 * itemsize + 12)   # dbuf in/out + ~3 f32 temps
    if (not force_two_pass) and fused_bytes <= tile_budget:
        out = pl.pallas_call(
            _make_fused_kernel(n, r, d),
            out_shape=jax.ShapeDtypeStruct((np_, dp), out_dtype),
            grid=(1,),
            in_specs=[pl.BlockSpec((np_, dp), lambda i: (0, 0))],
            out_specs=pl.BlockSpec((np_, dp), lambda i: (0, 0)),
            compiler_params=pltpu.CompilerParams(
                dimension_semantics=("arbitrary",),
                vmem_limit_bytes=vmem_limit),
        )(xw)
        return out if r == 1 else out.reshape(n, d)

    # ---- Phase A: per-tile partial column sums (parallel grid) --------------
    # Phase A only double-buffers its input tile, so it affords ~2x Phase B rows.
    bytes_per_row_a = dp * (2 * itemsize + 4)
    tm_a = _pick_row_tile(np_, bytes_per_row_a, tile_budget, sub)
    grid_a = (pl.cdiv(np_, tm_a),)
    partials = pl.pallas_call(
        _make_col_sum_kernel(np_, tm_a),
        out_shape=jax.ShapeDtypeStruct((grid_a[0], 1, dp), jnp.float32),
        grid=grid_a,
        in_specs=[pl.BlockSpec((tm_a, dp), lambda i: (i, 0))],
        out_specs=pl.BlockSpec((1, 1, dp), lambda i: (i, 0, 0)),
        compiler_params=pltpu.CompilerParams(
            dimension_semantics=("parallel",),
            vmem_limit_bytes=vmem_limit),
    )(xw)

    # Tiny XLA-side reduction: fold packed offsets and pre-scale by 1/N so
    # Phase B only subtracts.
    col_sum = jnp.sum(partials, axis=(0, 1))                    # [Dp]
    if r > 1:
        col_sum = jnp.sum(col_sum.reshape(r, d), axis=0)        # [D]
    mean = col_sum * (1.0 / float(n))
    if r > 1:
        mean = jnp.tile(mean, r)                                # back to packed layout
    mean = mean.reshape(1, dp).astype(jnp.float32)

    # ---- Phase B: center + row-normalize, lane-dense stores -----------------
    bytes_per_row_b = dp * (4 * itemsize + 8)
    tm_b = _pick_row_tile(np_, bytes_per_row_b, tile_budget, sub)
    grid_b = (pl.cdiv(np_, tm_b),)
    out = pl.pallas_call(
        _make_normalize_kernel(r, d),
        out_shape=jax.ShapeDtypeStruct((np_, dp), out_dtype),
        grid=grid_b,
        in_specs=[pl.BlockSpec((tm_b, dp), lambda i: (i, 0)),
                  pl.BlockSpec((1, dp), lambda i: (0, 0))],
        out_specs=pl.BlockSpec((tm_b, dp), lambda i: (i, 0)),
        compiler_params=pltpu.CompilerParams(
            dimension_semantics=("parallel",),
            vmem_limit_bytes=vmem_limit),
    )(xw, mean)
    return out if r == 1 else out.reshape(n, d)


def to_sphere_ref(x: jax.Array) -> jax.Array:
    """Pure-JAX reference mirroring the PyTorch forward exactly."""
    xc = x - jnp.mean(x, axis=0)
    return xc / jnp.linalg.norm(xc, axis=1, keepdims=True)


if __name__ == "__main__":
    # 1) Small production-like shape (D < 128): packed lane-dense + fused path.
    N, D = 8, 32
    x = jax.random.normal(jax.random.PRNGKey(0), (N, D), dtype=jnp.float32)
    out = jax.block_until_ready(to_sphere(x))
    ref = to_sphere_ref(x)
    assert out.shape == (N, D) and out.dtype == x.dtype
    assert jnp.allclose(out, ref, atol=1e-4, rtol=1e-4), "mismatch (packed fused)"

    # 2) Unpacked (D multiple of 128) fused path, non-sublane-aligned N.
    x2 = jax.random.normal(jax.random.PRNGKey(1), (1021, 512), dtype=jnp.float32)
    out2 = jax.block_until_ready(to_sphere(x2))
    assert jnp.allclose(out2, to_sphere_ref(x2), atol=1e-4, rtol=1e-4), \
        "mismatch (unpacked fused)"

    # 3) Two-pass pipelined path: >=2 grid steps, masked partial last tile.
    x3 = jax.random.normal(jax.random.PRNGKey(2), (2053, 512), dtype=jnp.float32)
    out3 = jax.block_until_ready(to_sphere(x3, force_two_pass=True))
    assert jnp.allclose(out3, to_sphere_ref(x3), atol=1e-4, rtol=1e-4), \
        "mismatch (unpacked two-pass)"

    # 4) Packed two-pass path (D=24 -> r=16 lane packing).
    x4 = jax.random.normal(jax.random.PRNGKey(3), (96, 24), dtype=jnp.float32)
    out4 = jax.block_until_ready(to_sphere(x4, force_two_pass=True))
    assert jnp.allclose(out4, to_sphere_ref(x4), atol=1e-4, rtol=1e-4), \
        "mismatch (packed two-pass)"

    # 5) bf16 dtype (sublane packing 16), packed fused path.
    x5 = jax.random.normal(jax.random.PRNGKey(4), (64, 32),
                           dtype=jnp.float32).astype(jnp.bfloat16)
    out5 = jax.block_until_ready(to_sphere(x5))
    ref5 = to_sphere_ref(x5.astype(jnp.float32)).astype(jnp.bfloat16)
    assert out5.dtype == jnp.bfloat16
    assert jnp.allclose(out5.astype(jnp.float32), ref5.astype(jnp.float32),
                        atol=2e-2, rtol=2e-2), "mismatch (bf16)"

    print("KERNEL_OK")
</pallas_src>

<mosaic_0001>
module attributes {stable_mosaic.version = 11 : i64} {
  func.func @kernel(%arg0: i32, %arg1: memref<2x128xf32, #tpu.memory_space<vmem>>, %arg2: memref<2x128xf32, #tpu.memory_space<vmem>>) attributes {dimension_semantics = [#tpu.dimension_semantics<arbitrary>], iteration_bounds = array<i64: 1>, scalar_prefetch = 0 : i64, scratch_operands = 0 : i64, tpu.core_type = #tpu.core_type<tc>, window_params = [{pipeline_mode = #tpu.pipeline_mode<synchronous>, transform_indices = @transform_0, window_bounds = array<i64: 2, 128>}, {pipeline_mode = #tpu.pipeline_mode<synchronous>, transform_indices = @transform_1, window_bounds = array<i64: 2, 128>}]} {
    %c0 = arith.constant 0 : index
    %c0_0 = arith.constant 0 : index
    %0 = vector.load %arg1[%c0, %c0_0] : memref<2x128xf32, #tpu.memory_space<vmem>>, vector<2x128xf32>
    %cst = arith.constant dense<0.000000e+00> : vector<128xf32>
    %1 = vector.multi_reduction <add>, %0, %cst [0] : vector<2x128xf32> to vector<128xf32>
    %2 = vector.shape_cast %1 : vector<128xf32> to vector<1x128xf32>
    %3 = vector.extract_strided_slice %2 {offsets = [0, 0], sizes = [1, 32], strides = [1, 1]} : vector<1x128xf32> to vector<1x32xf32>
    %4 = vector.extract_strided_slice %2 {offsets = [0, 32], sizes = [1, 32], strides = [1, 1]} : vector<1x128xf32> to vector<1x32xf32>
    %5 = arith.addf %3, %4 : vector<1x32xf32>
    %6 = vector.extract_strided_slice %2 {offsets = [0, 64], sizes = [1, 32], strides = [1, 1]} : vector<1x128xf32> to vector<1x32xf32>
    %7 = arith.addf %5, %6 : vector<1x32xf32>
    %8 = vector.extract_strided_slice %2 {offsets = [0, 96], sizes = [1, 32], strides = [1, 1]} : vector<1x128xf32> to vector<1x32xf32>
    %9 = arith.addf %7, %8 : vector<1x32xf32>
    %cst_1 = arith.constant 1.250000e-01 : f32
    %10 = vector.broadcast %cst_1 : f32 to vector<1x32xf32>
    %11 = arith.mulf %9, %10 : vector<1x32xf32>
    %12 = tpu.concatenate %11, %11, %11, %11 in 1 : vector<1x32xf32>, vector<1x32xf32>, vector<1x32xf32>, vector<1x32xf32> -> vector<1x128xf32>
    %13 = vector.broadcast %12 : vector<1x128xf32> to vector<2x128xf32>
    %14 = arith.subf %0, %13 : vector<2x128xf32>
    %15 = vector.extract_strided_slice %14 {offsets = [0, 0], sizes = [2, 32], strides = [1, 1]} : vector<2x128xf32> to vector<2x32xf32>
    %16 = arith.mulf %15, %15 : vector<2x32xf32>
    %cst_2 = arith.constant dense<0.000000e+00> : vector<2xf32>
    %17 = vector.multi_reduction <add>, %16, %cst_2 [1] : vector<2x32xf32> to vector<2xf32>
    %18 = vector.shape_cast %17 : vector<2xf32> to vector<2x1xf32>
    %19 = math.rsqrt %18 : vector<2x1xf32>
    %20 = vector.broadcast %19 : vector<2x1xf32> to vector<2x32xf32>
    %21 = arith.mulf %15, %20 : vector<2x32xf32>
    %22 = vector.extract_strided_slice %14 {offsets = [0, 32], sizes = [2, 32], strides = [1, 1]} : vector<2x128xf32> to vector<2x32xf32>
    %23 = arith.mulf %22, %22 : vector<2x32xf32>
    %cst_3 = arith.constant dense<0.000000e+00> : vector<2xf32>
    %24 = vector.multi_reduction <add>, %23, %cst_3 [1] : vector<2x32xf32> to vector<2xf32>
    %25 = vector.shape_cast %24 : vector<2xf32> to vector<2x1xf32>
    %26 = math.rsqrt %25 : vector<2x1xf32>
    %27 = vector.broadcast %26 : vector<2x1xf32> to vector<2x32xf32>
    %28 = arith.mulf %22, %27 : vector<2x32xf32>
    %29 = vector.extract_strided_slice %14 {offsets = [0, 64], sizes = [2, 32], strides = [1, 1]} : vector<2x128xf32> to vector<2x32xf32>
    %30 = arith.mulf %29, %29 : vector<2x32xf32>
    %cst_4 = arith.constant dense<0.000000e+00> : vector<2xf32>
    %31 = vector.multi_reduction <add>, %30, %cst_4 [1] : vector<2x32xf32> to vector<2xf32>
    %32 = vector.shape_cast %31 : vector<2xf32> to vector<2x1xf32>
    %33 = math.rsqrt %32 : vector<2x1xf32>
    %34 = vector.broadcast %33 : vector<2x1xf32> to vector<2x32xf32>
    %35 = arith.mulf %29, %34 : vector<2x32xf32>
    %36 = vector.extract_strided_slice %14 {offsets = [0, 96], sizes = [2, 32], strides = [1, 1]} : vector<2x128xf32> to vector<2x32xf32>
    %37 = arith.mulf %36, %36 : vector<2x32xf32>
    %cst_5 = arith.constant dense<0.000000e+00> : vector<2xf32>
    %38 = vector.multi_reduction <add>, %37, %cst_5 [1] : vector<2x32xf32> to vector<2xf32>
    %39 = vector.shape_cast %38 : vector<2xf32> to vector<2x1xf32>
    %40 = math.rsqrt %39 : vector<2x1xf32>
    %41 = vector.broadcast %40 : vector<2x1xf32> to vector<2x32xf32>
    %42 = arith.mulf %36, %41 : vector<2x32xf32>
    %43 = tpu.concatenate %21, %28, %35, %42 in 1 : vector<2x32xf32>, vector<2x32xf32>, vector<2x32xf32>, vector<2x32xf32> -> vector<2x128xf32>
    %c0_6 = arith.constant 0 : index
    %c0_7 = arith.constant 0 : index
    %44 = vector.load %arg2[%c0_6, %c0_7] : memref<2x128xf32, #tpu.memory_space<vmem>>, vector<2x128xf32>
    tpu.vector_store %arg2[%c0_6, %c0_7], %43 {strides = array<i32>} : memref<2x128xf32, #tpu.memory_space<vmem>>, vector<2x128xf32>,
    return
  }
  func.func @transform_0(%arg0: i32) -> (i32, i32) {
    %c0_i32 = arith.constant 0 : i32
    %c0_i32_0 = arith.constant 0 : i32
    %c0_i32_1 = arith.constant 0 : i32
    return %c0_i32, %c0_i32_0 : i32, i32
  }
  func.func @transform_1(%arg0: i32) -> (i32, i32) {
    %c0_i32 = arith.constant 0 : i32
    %c0_i32_0 = arith.constant 0 : i32
    %c0_i32_1 = arith.constant 0 : i32
    return %c0_i32, %c0_i32_0 : i32, i32
  }
}

</mosaic_0001>

<llo_original>
// kernel: tpu_custom_call.1
$region0: #{tpu_custom_call.1}
  #allocation0 [shape = 'u32[]', space=smem, size = 0x4, offset = 0x4, fixed_abs, tag = 'smem constant byte address 0x4 - core index']
  #allocation1 [shape = 'u32[144,128]{1,0:T(1,128)}', space=vmem, size = 0x12000, scoped, tag = 'internal scratch']
  %s0 = inlined_call_operand.hbm [shape: f32[2,128], index: 0, kind: input, shape index: {}]
  %s1 = inlined_call_operand.hbm [shape: f32[2,128], index: 1, kind: output, shape index: {}]
  %s2 = sld [smem:[#allocation0]]
  $region18: #{tpu_custom_call.1} parent=0
    _
  %s4 = ssub.s32 1, %s2
  %s5 = scalar_select 0, %s4, %s2
  $region1: #{tpu_custom_call.1} parent=0
    #allocation2 [shape = 'u8[1024]{0}', space=vmem, size = 0x400, scoped, tag = 'input window, operand 0, single buffered']
    #allocation3 [shape = 's32[1]{0}', space=sflag, size = 0x4, scoped, tag = 'scoped memory for tpu_custom_call.1']
    #allocation4 [shape = 's32[1]{0}', space=sflag, size = 0x4, scoped, tag = 'scoped memory for tpu_custom_call.1']
    #allocation5 [shape = 'u8[1024]{0}', space=vmem, size = 0x400, scoped, tag = 'output window, operand 0, single buffered']
    %6 = vsyncpa [#allocation3], 0
    %7 = vsyncpa [#allocation4], 0
    // Predicated region
    $region2: #{tpu_custom_call.1} parent=1 // pred_check
      _
    $region3: #{tpu_custom_call.1} parent=1 // pred_check_branch
      %9 = sbr.rel (0) target = $region5
    $region4: #{tpu_custom_call.1} parent=1 // pred_region
      %s11 = ssub.s32 32, 32
      %12 = vsyncadd [#allocation3], %s11
      %s14 = sshll.u32 [#allocation2], 4
      %s15 = int_to_ptr.vmem [resolvable:$true] %s14
      %17 = dma.hbm_to_vmem [thread:$0]  %s0, 32, %s15, [#allocation3]
    $region5: #{tpu_custom_call.1} parent=1 // pred_fallthru
      _
    // Predicated region
    $region6: #{tpu_custom_call.1} parent=1 // pred_check
      _
    $region7: #{tpu_custom_call.1} parent=1 // pred_check_branch
      %19 = sbr.rel (0) target = $region9
    $region8: #{tpu_custom_call.1} parent=1 // pred_region
      %20 = dma.done [#allocation3], 32
    $region9: #{tpu_custom_call.1} parent=1 // pred_fallthru
      _
    %v21 = vld [vmem:[#allocation2] sm:$0x3]
    %vm22 = vcmask 1041408
    %v23 = vsel %vm22, %v21, 0.0
    %v24 = vrot.slane %v23, 4
    %v25 = vadd.f32 %v23, %v24
    %v26 = vrot.slane %v25, 2
    %v27 = vadd.f32 %v25, %v26
    %v28 = vrot.slane %v27, 1
    %v29 = vadd.f32 %v27, %v28
    %31 = vrot.lane.b32.xlu0 %v29, 96
    %v32 = vpop.permute.xlu0 %31
    %v34 = vadd.f32 %v29, %v32
    %35 = vrot.lane.b32.xlu0 %v29, 64
    %v36 = vpop.permute.xlu0 %35
    %v38 = vadd.f32 %v34, %v36
    %39 = vrot.lane.b32.xlu0 %v29, 32
    %v40 = vpop.permute.xlu0 %39
    %v42 = vadd.f32 %v38, %v40
    %v43 = vmul.f32 %v42, 0.125
    %45 = vrot.lane.b32.xlu0 %v43, 32
    %v46 = vpop.permute.xlu0 %45
    %48 = vrot.lane.b32.xlu0 %v43, 64
    %v49 = vpop.permute.xlu0 %48
    %51 = vrot.lane.b32.xlu0 %v43, 96
    %v52 = vpop.permute.xlu0 %51
    %vm54 = vcmask 261120
    %v55 = vsel %vm54, %v43, %v46
    %vm56 = vcmask 523264
    %v57 = vsel %vm56, %v55, %v49
    %vm58 = vcmask 785408
    %v59 = vsel %vm58, %v57, %v52
    %v60 = vlaneseq
    %v61 = vshrl.u32 %v60, 7
    %v62 = vsub.s32 0, %v61
    %v63 = vrot.slane %v59, %v62
    %v64 = vsub.f32 %v21, %v63
    %v65 = vmul.f32 %v64, %v64
    %vm66 = vcmask 254976
    %v67 = vsel %vm66, %v65, 0.0
    %68 = vadd.xlane.f32.xlu0 %v67
    %v69 = vpop.xlane.xlu0 %68
    %v70 = vrsqrt.pop %v69
    %v71 = vmul.f32 %v64, %v70
    %73 = vrot.lane.b32.xlu0 %v65, 96
    %v74 = vpop.permute.xlu0 %73
    %v76 = vsel %vm66, %v74, 0.0
    %77 = vadd.xlane.f32.xlu0 %v76
    %v78 = vpop.xlane.xlu0 %77
    %v79 = vrsqrt.pop %v78
    %v80 = vmul.f32 %v64, %v79
    %81 = vrot.lane.b32.xlu0 %v65, 64
    %v82 = vpop.permute.xlu0 %81
    %v84 = vsel %vm66, %v82, 0.0
    %85 = vadd.xlane.f32.xlu0 %v84
    %v86 = vpop.xlane.xlu0 %85
    %v87 = vrsqrt.pop %v86
    %v88 = vmul.f32 %v64, %v87
    %89 = vrot.lane.b32.xlu0 %v65, 32
    %v90 = vpop.permute.xlu0 %89
    %v92 = vsel %vm66, %v90, 0.0
    %93 = vadd.xlane.f32.xlu0 %v92
    %v94 = vpop.xlane.xlu0 %93
    %v95 = vrsqrt.pop %v94
    %v96 = vmul.f32 %v64, %v95
    %v97 = vsel %vm54, %v71, %v80
    %v98 = vsel %vm56, %v97, %v88
    %v99 = vsel %vm58, %v98, %v96
    %100 = vst [vmem:[#allocation5] sm:$0x3] %v99
    // Predicated region
    $region10: #{tpu_custom_call.1} parent=1 // pred_check
      _
    $region11: #{tpu_custom_call.1} parent=1 // pred_check_branch
      %102 = sbr.rel (0) target = $region13
    $region12: #{tpu_custom_call.1} parent=1 // pred_region
      %s104 = ssub.s32 32, 32
      %105 = vsyncadd [#allocation4], %s104
      %s107 = sshll.u32 [#allocation5], 4
      %s108 = int_to_ptr.vmem [resolvable:$true] %s107
      %110 = dma.vmem_to_hbm [thread:$0]  %s108, 32, %s1, [#allocation4]
    $region13: #{tpu_custom_call.1} parent=1 // pred_fallthru
      _
    // Predicated region
    $region14: #{tpu_custom_call.1} parent=1 // pred_check
      _
    $region15: #{tpu_custom_call.1} parent=1 // pred_check_branch
      %112 = sbr.rel (0) target = $region17
    $region16: #{tpu_custom_call.1} parent=1 // pred_region
      %113 = dma.done [#allocation4], 32
    $region17: #{tpu_custom_call.1} parent=1 // pred_fallthru
      _
    %114 = vsyncpa [#allocation3], 1
    %115 = vsyncpa [#allocation4], 1

</llo_original>
